<compile_context>
chip_gen: v7x
topology: tpu7x:2x2x1
jax: 0.10.0
libtpu: 0.0.40
codegen_flags: <defaults>
</compile_context>

<pallas_src>
import functools

import jax
import jax.numpy as jnp
from jax import lax
from jax.experimental import pallas as pl
from jax.experimental.pallas import tpu as pltpu

INIT_EMB_MEAN = 0.0
INIT_EMB_STD = 0.01

# Small synthetic label vocabularies (stand-ins for STANCE2ID / DISCO2ID).
STANCE2ID = {"none": 0, "support": 1, "attack": 2, "neutral": 3}
DISCO2ID = {f"rel_{i}": i for i in range(8)}

_LANE = 128
_BF16_SUBLANE = 16  # bf16 packs 16 rows per vreg sublane group


def _round_up(x, m):
    return (x + m - 1) // m * m


# -----------------------------------------------------------------------------
# Kernel
# -----------------------------------------------------------------------------
def _fused_head_kernel(x1_ref, x2_ref, w1_ref, w2_ref, out_ref):
    """One fused bilinear-scoring step for a TILE_B batch block.

    x1_ref, x2_ref : [TILE_B, D]      VMEM, bf16
    w1_ref, w2_ref : [L_pad, D]       VMEM, bf16 (tau pre-folded, zero-padded to 128 labels)
    out_ref        : [TILE_B, L_pad]  VMEM, f32 (lane-dense output slab)
    """
    dn = (((1,), (1,)), ((), ()))  # contract embed dim of x with embed dim of w (no transpose)
    acc = lax.dot_general(x1_ref[...], w1_ref[...], dimension_numbers=dn,
                          preferred_element_type=jnp.float32)
    acc = acc + lax.dot_general(x2_ref[...], w2_ref[...], dimension_numbers=dn,
                                preferred_element_type=jnp.float32)
    out_ref[...] = acc


# -----------------------------------------------------------------------------
# One-time parameter prep (hoisted out of the per-call hot path)
# -----------------------------------------------------------------------------
def prepare_fused_weights(params):
    """Fuse both heads along the label axis, fold tau into the rows, pad to a
    lane-dense 128-wide label axis, and cast to bf16. Call once; reuse the
    result for every encoder_scores() call."""
    S = params["stance_w1"].shape[0]
    Dc = params["disco_w1"].shape[0]
    L = S + Dc
    L_pad = _round_up(max(L, 1), _LANE)

    w1 = jnp.concatenate([params["stance_t"][0] * params["stance_w1"],
                          params["disco_t"][0] * params["disco_w1"]], axis=0)
    w2 = jnp.concatenate([params["stance_t"][0] * params["stance_w2"],
                          params["disco_t"][0] * params["disco_w2"]], axis=0)
    w1 = jnp.pad(w1, ((0, L_pad - L), (0, 0))).astype(jnp.bfloat16)
    w2 = jnp.pad(w2, ((0, L_pad - L), (0, 0))).astype(jnp.bfloat16)
    return w1, w2


# -----------------------------------------------------------------------------
# Tiling heuristic (VMEM-budget aware, v7x dual-TC friendly)
# -----------------------------------------------------------------------------
def _choose_tile_b(B, D, L_pad, *, in_bytes=2, out_bytes=4, budget=40 << 20):
    # >= 2 grid steps when B allows it (so "parallel" can feed both v7x TCs),
    # and split the batch evenly so padding is at most one bf16 sublane group.
    num_tiles = max(2, pl.cdiv(B, 512))
    tile_b = max(_round_up(pl.cdiv(B, num_tiles), _BF16_SUBLANE), _BF16_SUBLANE)

    def live_bytes(tb):
        return (2 * 2 * tb * D * in_bytes        # x1, x2 double-buffered (bf16)
                + 2 * 2 * L_pad * D * in_bytes   # w1, w2 (2 bufs each, resident)
                + 2 * tb * L_pad * out_bytes)    # f32 output, double-buffered

    while tile_b > _BF16_SUBLANE and live_bytes(tile_b) > budget:
        tile_b = max(_round_up(tile_b // 2, _BF16_SUBLANE), _BF16_SUBLANE)
    return tile_b, live_bytes(tile_b)


# -----------------------------------------------------------------------------
# Wrapper
# -----------------------------------------------------------------------------
@functools.partial(jax.jit, static_argnames=("num_stances", "num_discos", "tile_b"))
def encoder_scores(x1, x2, w1_fused, w2_fused, *, num_stances, num_discos, tile_b=None):
    """x1, x2: [B, D] float32. w*_fused: prepare_fused_weights() output.

    Returns (stance_logits [B, num_stances], disco_logits [B, num_discos]) in f32.
    """
    B, D = x1.shape
    L_pad = w1_fused.shape[0]

    # bf16 activations; accumulation stays f32 inside the kernel.
    x1 = x1.astype(jnp.bfloat16)
    x2 = x2.astype(jnp.bfloat16)

    if tile_b is None:
        tile_b, live = _choose_tile_b(B, D, L_pad)
    else:
        tile_b = max(_round_up(tile_b, _BF16_SUBLANE), _BF16_SUBLANE)
        live = (2 * 2 * tile_b * D * 2 + 2 * 2 * L_pad * D * 2 + 2 * tile_b * L_pad * 4)

    B_pad = _round_up(B, tile_b)
    if B_pad != B:
        x1 = jnp.pad(x1, ((0, B_pad - B), (0, 0)))
        x2 = jnp.pad(x2, ((0, B_pad - B), (0, 0)))

    grid = (B_pad // tile_b,)

    # Explicit scoped-VMEM limit: raises v5e's 16 MiB default when needed while
    # staying comfortably under v7x's 64 MiB physical VMEM.
    vmem_limit = int(min(max(live * 2, 32 << 20), 48 << 20))

    cost = pl.CostEstimate(
        flops=4 * B_pad * D * L_pad,
        transcendentals=0,
        bytes_accessed=2 * (2 * B_pad * D + 2 * L_pad * D) + 4 * B_pad * L_pad,
    )

    out = pl.pallas_call(
        _fused_head_kernel,
        out_shape=jax.ShapeDtypeStruct((B_pad, L_pad), jnp.float32),
        grid_spec=pltpu.PrefetchScalarGridSpec(
            num_scalar_prefetch=0,
            grid=grid,
            in_specs=[
                pl.BlockSpec((tile_b, D), lambda i: (i, 0)),   # x1 batch tile (bf16)
                pl.BlockSpec((tile_b, D), lambda i: (i, 0)),   # x2 batch tile (bf16)
                pl.BlockSpec((L_pad, D), lambda i: (0, 0)),    # fused w1 (resident)
                pl.BlockSpec((L_pad, D), lambda i: (0, 0)),    # fused w2 (resident)
            ],
            out_specs=pl.BlockSpec((tile_b, L_pad), lambda i: (i, 0)),
        ),
        compiler_params=pltpu.CompilerParams(
            dimension_semantics=("parallel",),
            vmem_limit_bytes=vmem_limit,
        ),
        cost_estimate=cost,
    )(x1, x2, w1_fused, w2_fused)

    stance_logits = out[:B, :num_stances]
    disco_logits = out[:B, num_stances:num_stances + num_discos]
    return stance_logits, disco_logits


# -----------------------------------------------------------------------------
# Parameter init mirroring Encoder.__init__ (normal(0, 0.01), row 0 zeroed)
# -----------------------------------------------------------------------------
def init_encoder_params(key, embed_dim, num_stances, num_discos, init_tau=1.0):
    k1, k2, k3, k4 = jax.random.split(key, 4)

    def emb(k, n):
        w = INIT_EMB_MEAN + INIT_EMB_STD * jax.random.normal(k, (n, embed_dim), jnp.float32)
        return w.at[0].set(0.0)

    return {
        "stance_t": jnp.full((1,), init_tau, jnp.float32),
        "disco_t": jnp.full((1,), init_tau, jnp.float32),
        "stance_w1": emb(k1, num_stances),
        "stance_w2": emb(k2, num_stances),
        "disco_w1": emb(k3, num_discos),
        "disco_w2": emb(k4, num_discos),
    }


if __name__ == "__main__":
    B = 8            # batch of (x1, x2) pairs
    D = 32           # embed_dim (get_embeding_dim())
    S = len(STANCE2ID)
    Dc = len(DISCO2ID)

    root = jax.random.PRNGKey(0)
    kp, kx1, kx2 = jax.random.split(root, 3)

    params = init_encoder_params(kp, D, S, Dc, init_tau=1.0)
    x1 = jax.random.normal(kx1, (B, D), jnp.float32)
    x2 = jax.random.normal(kx2, (B, D), jnp.float32)

    # One-time weight fusion (tau folded, padded, bf16) — reused across calls.
    w1f, w2f = prepare_fused_weights(params)

    stance_logits, disco_logits = jax.block_until_ready(
        encoder_scores(x1, x2, w1f, w2f, num_stances=S, num_discos=Dc))

    assert stance_logits.shape == (B, S) and disco_logits.shape == (B, Dc)

    # (1) Exact-ish check against the same bf16-rounded operands (kernel math).
    x1b = x1.astype(jnp.bfloat16).astype(jnp.float32)
    x2b = x2.astype(jnp.bfloat16).astype(jnp.float32)
    w1b = w1f.astype(jnp.float32)
    w2b = w2f.astype(jnp.float32)
    ref_b = x1b @ w1b.T + x2b @ w2b.T
    assert jnp.allclose(stance_logits, ref_b[:, :S], atol=1e-4, rtol=1e-4)
    assert jnp.allclose(disco_logits, ref_b[:, S:S + Dc], atol=1e-4, rtol=1e-4)

    # (2) Semantic check against the pure-f32 reference (loose: bf16 inputs).
    ref_stance = params["stance_t"][0] * (x1 @ params["stance_w1"].T + x2 @ params["stance_w2"].T)
    ref_disco = params["disco_t"][0] * (x1 @ params["disco_w1"].T + x2 @ params["disco_w2"].T)
    assert jnp.allclose(stance_logits, ref_stance, atol=5e-3, rtol=5e-2)
    assert jnp.allclose(disco_logits, ref_disco, atol=5e-3, rtol=5e-2)

    print("KERNEL_OK")
</pallas_src>

<mosaic_0001>
module attributes {stable_mosaic.version = 11 : i64} {
  func.func @_fused_head_kernel(%arg0: i32, %arg1: memref<16x32xbf16, #tpu.memory_space<vmem>>, %arg2: memref<16x32xbf16, #tpu.memory_space<vmem>>, %arg3: memref<128x32xbf16, #tpu.memory_space<vmem>>, %arg4: memref<128x32xbf16, #tpu.memory_space<vmem>>, %arg5: memref<16x128xf32, #tpu.memory_space<vmem>>) attributes {dimension_semantics = [#tpu.dimension_semantics<parallel>], iteration_bounds = array<i64: 1>, scalar_prefetch = 0 : i64, scratch_operands = 0 : i64, tpu.core_type = #tpu.core_type<tc>, window_params = [{transform_indices = @transform_0, window_bounds = array<i64: 16, 32>}, {transform_indices = @transform_1, window_bounds = array<i64: 16, 32>}, {pipeline_mode = #tpu.pipeline_mode<synchronous>, transform_indices = @transform_2, window_bounds = array<i64: 128, 32>}, {pipeline_mode = #tpu.pipeline_mode<synchronous>, transform_indices = @transform_3, window_bounds = array<i64: 128, 32>}, {transform_indices = @transform_4, window_bounds = array<i64: 16, 128>}]} {
    %c0 = arith.constant 0 : index
    %c0_0 = arith.constant 0 : index
    %0 = vector.load %arg1[%c0, %c0_0] : memref<16x32xbf16, #tpu.memory_space<vmem>>, vector<16x32xbf16>
    %c0_1 = arith.constant 0 : index
    %c0_2 = arith.constant 0 : index
    %1 = vector.load %arg3[%c0_1, %c0_2] : memref<128x32xbf16, #tpu.memory_space<vmem>>, vector<128x32xbf16>
    %cst = arith.constant dense<0.000000e+00> : vector<16x128xf32>
    %2 = tpu.matmul %0, %1, %cst {dimension_numbers = #tpu.dot_dimension_numbers<[1], [1], [0], [0], [0, 0, 1, 0], [], []>} : vector<16x32xbf16>, vector<128x32xbf16>, vector<16x128xf32> -> vector<16x128xf32>
    %c0_3 = arith.constant 0 : index
    %c0_4 = arith.constant 0 : index
    %3 = vector.load %arg2[%c0_3, %c0_4] : memref<16x32xbf16, #tpu.memory_space<vmem>>, vector<16x32xbf16>
    %c0_5 = arith.constant 0 : index
    %c0_6 = arith.constant 0 : index
    %4 = vector.load %arg4[%c0_5, %c0_6] : memref<128x32xbf16, #tpu.memory_space<vmem>>, vector<128x32xbf16>
    %cst_7 = arith.constant dense<0.000000e+00> : vector<16x128xf32>
    %5 = tpu.matmul %3, %4, %cst_7 {dimension_numbers = #tpu.dot_dimension_numbers<[1], [1], [0], [0], [0, 0, 1, 0], [], []>} : vector<16x32xbf16>, vector<128x32xbf16>, vector<16x128xf32> -> vector<16x128xf32>
    %6 = arith.addf %2, %5 : vector<16x128xf32>
    %c0_8 = arith.constant 0 : index
    %c0_9 = arith.constant 0 : index
    %7 = vector.load %arg5[%c0_8, %c0_9] : memref<16x128xf32, #tpu.memory_space<vmem>>, vector<16x128xf32>
    tpu.vector_store %arg5[%c0_8, %c0_9], %6 {strides = array<i32>} : memref<16x128xf32, #tpu.memory_space<vmem>>, vector<16x128xf32>,
    return
  }
  func.func @transform_0(%arg0: i32) -> (i32, i32) {
    %c0_i32 = arith.constant 0 : i32
    %c0_i32_0 = arith.constant 0 : i32
    return %arg0, %c0_i32 : i32, i32
  }
  func.func @transform_1(%arg0: i32) -> (i32, i32) {
    %c0_i32 = arith.constant 0 : i32
    %c0_i32_0 = arith.constant 0 : i32
    return %arg0, %c0_i32 : i32, i32
  }
  func.func @transform_2(%arg0: i32) -> (i32, i32) {
    %c0_i32 = arith.constant 0 : i32
    %c0_i32_0 = arith.constant 0 : i32
    %c0_i32_1 = arith.constant 0 : i32
    return %c0_i32, %c0_i32_0 : i32, i32
  }
  func.func @transform_3(%arg0: i32) -> (i32, i32) {
    %c0_i32 = arith.constant 0 : i32
    %c0_i32_0 = arith.constant 0 : i32
    %c0_i32_1 = arith.constant 0 : i32
    return %c0_i32, %c0_i32_0 : i32, i32
  }
  func.func @transform_4(%arg0: i32) -> (i32, i32) {
    %c0_i32 = arith.constant 0 : i32
    %c0_i32_0 = arith.constant 0 : i32
    return %arg0, %c0_i32 : i32, i32
  }
}

</mosaic_0001>

<llo_original>
// kernel: encoder_scores.1
$region0: #{encoder_scores.1}
  #allocation0 [shape = 'u32[]', space=smem, size = 0x4, offset = 0x4, fixed_abs, tag = 'smem constant byte address 0x4 - core index']
  #allocation1 [shape = 'u32[144,128]{1,0:T(1,128)}', space=vmem, size = 0x12000, scoped, tag = 'internal scratch']
  %s0 = inlined_call_operand.vmem [shape: bf16[16,32], index: 0, kind: input, shape index: {}]
  %s1 = inlined_call_operand.vmem [shape: bf16[16,32], index: 1, kind: input, shape index: {}]
  %s2 = inlined_call_operand.vmem [shape: bf16[128,32], index: 2, kind: input, shape index: {}]
  %s3 = inlined_call_operand.vmem [shape: bf16[128,32], index: 3, kind: input, shape index: {}]
  %s4 = inlined_call_operand.vmem [shape: f32[16,128], index: 4, kind: output, shape index: {}]
  %s5 = sld [smem:[#allocation0]]
  $region26: #{encoder_scores.1} parent=0
    _
  %s7 = ssub.s32 1, %s5
  %s8 = scalar_select 0, %s7, %s5
  // Predicated region
  $region2: #{encoder_scores.1} parent=0 // pred_check
    _
  $region3: #{encoder_scores.1} parent=0 // pred_check_branch
    %10 = sbr.rel (0) target = $region5
  $region4: #{encoder_scores.1} parent=0 // pred_region
    _
  $region5: #{encoder_scores.1} parent=0 // pred_fallthru
    _
  // Predicated region
  $region6: #{encoder_scores.1} parent=0 // pred_check
    _
  $region7: #{encoder_scores.1} parent=0 // pred_check_branch
    %12 = sbr.rel (0) target = $region9
  $region8: #{encoder_scores.1} parent=0 // pred_region
    _
  $region9: #{encoder_scores.1} parent=0 // pred_fallthru
    _
  // Predicated region
  $region10: #{encoder_scores.1} parent=0 // pred_check
    _
  $region11: #{encoder_scores.1} parent=0 // pred_check_branch
    %14 = sbr.rel (0) target = $region13
  $region12: #{encoder_scores.1} parent=0 // pred_region
    _
  $region13: #{encoder_scores.1} parent=0 // pred_fallthru
    _
  // Predicated region
  $region14: #{encoder_scores.1} parent=0 // pred_check
    _
  $region15: #{encoder_scores.1} parent=0 // pred_check_branch
    %16 = sbr.rel (0) target = $region17
  $region16: #{encoder_scores.1} parent=0 // pred_region
    _
  $region17: #{encoder_scores.1} parent=0 // pred_fallthru
    _
  %v18 = vld [vmem:[%s0] sm:$0xf]
  %v19 = vld [vmem:[%s0 + $0x4] sm:$0xf]
  %v20 = vld [vmem:[%s2] sm:$0xf]
  %v21 = vld [vmem:[%s2 + $0x4] sm:$0xf]
  %v22 = vld [vmem:[%s2 + $0x8] sm:$0xf]
  %v23 = vld [vmem:[%s2 + $0xc] sm:$0xf]
  %v24 = vld [vmem:[%s2 + $0x10] sm:$0xf]
  %v25 = vld [vmem:[%s2 + $0x14] sm:$0xf]
  %v26 = vld [vmem:[%s2 + $0x18] sm:$0xf]
  %v27 = vld [vmem:[%s2 + $0x1c] sm:$0xf]
  %v28 = vld [vmem:[%s2 + $0x20] sm:$0xf]
  %v29 = vld [vmem:[%s2 + $0x24] sm:$0xf]
  %v30 = vld [vmem:[%s2 + $0x28] sm:$0xf]
  %v31 = vld [vmem:[%s2 + $0x2c] sm:$0xf]
  %v32 = vld [vmem:[%s2 + $0x30] sm:$0xf]
  %v33 = vld [vmem:[%s2 + $0x34] sm:$0xf]
  %v34 = vld [vmem:[%s2 + $0x38] sm:$0xf]
  %v35 = vld [vmem:[%s2 + $0x3c] sm:$0xf]
  %v36 = vld [vmem:[%s1] sm:$0xf]
  %v37 = vld [vmem:[%s1 + $0x4] sm:$0xf]
  %v38 = vld [vmem:[%s3] sm:$0xf]
  %v39 = vld [vmem:[%s3 + $0x4] sm:$0xf]
  %v40 = vld [vmem:[%s3 + $0x8] sm:$0xf]
  %v41 = vld [vmem:[%s3 + $0xc] sm:$0xf]
  %v42 = vld [vmem:[%s3 + $0x10] sm:$0xf]
  %v43 = vld [vmem:[%s3 + $0x14] sm:$0xf]
  %v44 = vld [vmem:[%s3 + $0x18] sm:$0xf]
  %v45 = vld [vmem:[%s3 + $0x1c] sm:$0xf]
  %v46 = vld [vmem:[%s3 + $0x20] sm:$0xf]
  %v47 = vld [vmem:[%s3 + $0x24] sm:$0xf]
  %v48 = vld [vmem:[%s3 + $0x28] sm:$0xf]
  %v49 = vld [vmem:[%s3 + $0x2c] sm:$0xf]
  %v50 = vld [vmem:[%s3 + $0x30] sm:$0xf]
  %v51 = vld [vmem:[%s3 + $0x34] sm:$0xf]
  %v52 = vld [vmem:[%s3 + $0x38] sm:$0xf]
  %v53 = vld [vmem:[%s3 + $0x3c] sm:$0xf]
  %v56 = vunpack.c.l.b16 %v36
  %v57 = vunpack.c.l.b16 %v37
  %v58 = vpack.c.b16 %v57, %v56
  %v75 = vunpack.c.l.b16 %v38
  %v76 = vunpack.c.l.b16 %v39
  %v77 = vunpack.c.l.b16 %v40
  %v78 = vunpack.c.l.b16 %v41
  %v79 = vunpack.c.l.b16 %v42
  %v80 = vunpack.c.l.b16 %v43
  %v81 = vunpack.c.l.b16 %v44
  %v82 = vunpack.c.l.b16 %v45
  %v83 = vunpack.c.l.b16 %v46
  %v84 = vunpack.c.l.b16 %v47
  %v85 = vunpack.c.l.b16 %v48
  %v86 = vunpack.c.l.b16 %v49
  %v87 = vunpack.c.l.b16 %v50
  %v88 = vunpack.c.l.b16 %v51
  %v89 = vunpack.c.l.b16 %v52
  %v90 = vunpack.c.l.b16 %v53
  %v91 = vpack.c.b16 %v76, %v75
  %v92 = vpack.c.b16 %v78, %v77
  %v93 = vpack.c.b16 %v80, %v79
  %v94 = vpack.c.b16 %v82, %v81
  %v95 = vpack.c.b16 %v84, %v83
  %v96 = vpack.c.b16 %v86, %v85
  %v97 = vpack.c.b16 %v88, %v87
  %v98 = vpack.c.b16 %v90, %v89
  %vm99 = vcmask 261120
  %v101 = vsel %vm99, %v58, 0
  %v104 = vsel %vm99, %v91, 0
  %v107 = vsel %vm99, %v92, 0
  %v110 = vsel %vm99, %v93, 0
  %v113 = vsel %vm99, %v94, 0
  %v116 = vsel %vm99, %v95, 0
  %v119 = vsel %vm99, %v96, 0
  %v122 = vsel %vm99, %v97, 0
  %v125 = vsel %vm99, %v98, 0
  %127 = vmatprep.subr.bf16.mxu0 0
  %128 = vmatpush1.bf16.xpose.msra.mxu0 %v104
  %129 = vmatprep.subr.bf16.mxu0 0
  %130 = vmatpush1.bf16.xpose.msra.mxu0 %v107
  %131 = vmatprep.subr.bf16.mxu0 0
  %132 = vmatpush1.bf16.xpose.msra.mxu0 %v110
  %133 = vmatprep.subr.bf16.mxu0 0
  %134 = vmatpush1.bf16.xpose.msra.mxu0 %v113
  %135 = vmatprep.subr.bf16.mxu0 0
  %136 = vmatpush1.bf16.xpose.msra.mxu0 %v116
  %137 = vmatprep.subr.bf16.mxu0 0
  %138 = vmatpush1.bf16.xpose.msra.mxu0 %v119
  %139 = vmatprep.subr.bf16.mxu0 0
  %140 = vmatpush1.bf16.xpose.msra.mxu0 %v122
  %141 = vmatprep.subr.bf16.mxu0 0
  %142 = vmatpush1.bf16.xpose.msra.mxu0 %v125
  %143 = vmatprep.subr.bf16.mxu0 0
  %144 = vmatpush1.bf16.xpose.msra.mxu0 0
  %145 = vmatprep.subr.bf16.mxu0 0
  %146 = vmatpush1.bf16.xpose.msra.mxu0 0
  %147 = vmatprep.subr.bf16.mxu0 0
  %148 = vmatpush1.bf16.xpose.msra.mxu0 0
  %149 = vmatprep.subr.bf16.mxu0 0
  %150 = vmatpush1.bf16.xpose.msra.mxu0 0
  %151 = vmatprep.subr.bf16.mxu0 0
  %152 = vmatpush1.bf16.xpose.msra.mxu0 0
  %153 = vmatprep.subr.bf16.mxu0 0
  %154 = vmatpush1.bf16.xpose.msra.mxu0 0
  %155 = vmatprep.subr.bf16.mxu0 0
  %156 = vmatpush1.bf16.xpose.msra.mxu0 0
  %157 = vmatprep.subr.bf16.mxu0 0
  %158 = vmatpush1.bf16.xpose.msra.mxu0 0
  %159 = vmatprep.mubr.bf16.mxu0 0
  %160 = vmatmul.mubr.bf16.gmra.mrb[0].mxu0 %v101
  %v161 = vpop.f32.mrb[0].mxu0
  %v162 = vadd.f32 0.0, %v161
  %v163 = vpop.f32.mrb[0].mxu0
  %v164 = vpop.f32.mrb[0].mxu0
  %v165 = vadd.f32 0.0, %v164
  %v166 = vpop.f32.mrb[0].mxu0
  %167 = vdwg.mxu0
  %v170 = vunpack.c.l.b16 %v18
  %v171 = vunpack.c.l.b16 %v19
  %v172 = vpack.c.b16 %v171, %v170
  %v189 = vunpack.c.l.b16 %v20
  %v190 = vunpack.c.l.b16 %v21
  %v191 = vunpack.c.l.b16 %v22
  %v192 = vunpack.c.l.b16 %v23
  %v193 = vunpack.c.l.b16 %v24
  %v194 = vunpack.c.l.b16 %v25
  %v195 = vunpack.c.l.b16 %v26
  %v196 = vunpack.c.l.b16 %v27
  %v197 = vunpack.c.l.b16 %v28
  %v198 = vunpack.c.l.b16 %v29
  %v199 = vunpack.c.l.b16 %v30
  %v200 = vunpack.c.l.b16 %v31
  %v201 = vunpack.c.l.b16 %v32
  %v202 = vunpack.c.l.b16 %v33
  %v203 = vunpack.c.l.b16 %v34
  %v204 = vunpack.c.l.b16 %v35
  %v205 = vpack.c.b16 %v190, %v189
  %v206 = vpack.c.b16 %v192, %v191
  %v207 = vpack.c.b16 %v194, %v193
  %v208 = vpack.c.b16 %v196, %v195
  %v209 = vpack.c.b16 %v198, %v197
  %v210 = vpack.c.b16 %v200, %v199
  %v211 = vpack.c.b16 %v202, %v201
  %v212 = vpack.c.b16 %v204, %v203
  %v214 = vsel %vm99, %v172, 0
  %v217 = vsel %vm99, %v205, 0
  %v220 = vsel %vm99, %v206, 0
  %v223 = vsel %vm99, %v207, 0
  %v226 = vsel %vm99, %v208, 0
  %v229 = vsel %vm99, %v209, 0
  %v232 = vsel %vm99, %v210, 0
  %v235 = vsel %vm99, %v211, 0
  %v238 = vsel %vm99, %v212, 0
  %240 = vmatprep.subr.bf16.mxu0 0
  %241 = vmatpush1.bf16.xpose.msra.mxu0 %v217
  %242 = vmatprep.subr.bf16.mxu0 0
  %243 = vmatpush1.bf16.xpose.msra.mxu0 %v220
  %244 = vmatprep.subr.bf16.mxu0 0
  %245 = vmatpush1.bf16.xpose.msra.mxu0 %v223
  %246 = vmatprep.subr.bf16.mxu0 0
  %247 = vmatpush1.bf16.xpose.msra.mxu0 %v226
  %248 = vmatprep.subr.bf16.mxu0 0
  %249 = vmatpush1.bf16.xpose.msra.mxu0 %v229
  %250 = vmatprep.subr.bf16.mxu0 0
  %251 = vmatpush1.bf16.xpose.msra.mxu0 %v232
  %252 = vmatprep.subr.bf16.mxu0 0
  %253 = vmatpush1.bf16.xpose.msra.mxu0 %v235
  %254 = vmatprep.subr.bf16.mxu0 0
  %255 = vmatpush1.bf16.xpose.msra.mxu0 %v238
  %256 = vmatprep.subr.bf16.mxu0 0
  %257 = vmatpush1.bf16.xpose.msra.mxu0 0
  %258 = vmatprep.subr.bf16.mxu0 0
  %259 = vmatpush1.bf16.xpose.msra.mxu0 0
  %260 = vmatprep.subr.bf16.mxu0 0
  %261 = vmatpush1.bf16.xpose.msra.mxu0 0
  %262 = vmatprep.subr.bf16.mxu0 0
  %263 = vmatpush1.bf16.xpose.msra.mxu0 0
  %264 = vmatprep.subr.bf16.mxu0 0
  %265 = vmatpush1.bf16.xpose.msra.mxu0 0
  %266 = vmatprep.subr.bf16.mxu0 0
  %267 = vmatpush1.bf16.xpose.msra.mxu0 0
  %268 = vmatprep.subr.bf16.mxu0 0
  %269 = vmatpush1.bf16.xpose.msra.mxu0 0
  %270 = vmatprep.subr.bf16.mxu0 0
  %271 = vmatpush1.bf16.xpose.msra.mxu0 0
  %272 = vmatprep.mubr.bf16.mxu0 0
  %273 = vmatmul.mubr.bf16.gmra.mrb[0].mxu0 %v214
  %v274 = vpop.f32.mrb[0].mxu0
  %v275 = vadd.f32 %v162, %v274
  %v276 = vpop.f32.mrb[0].mxu0
  %v277 = vpop.f32.mrb[0].mxu0
  %v278 = vadd.f32 %v165, %v277
  %v279 = vpop.f32.mrb[0].mxu0
  %280 = vdwg.mxu0
  %281 = vst [vmem:[%s4] sm:$0xff] %v275
  %282 = vst [vmem:[%s4 + $0x8] sm:$0xff] %v278
  // Predicated region
  $region18: #{encoder_scores.1} parent=0 // pred_check
    _
  $region19: #{encoder_scores.1} parent=0 // pred_check_branch
    %284 = sbr.rel (0) target = $region21
  $region20: #{encoder_scores.1} parent=0 // pred_region
    _
  $region21: #{encoder_scores.1} parent=0 // pred_fallthru
    _
  // Predicated region
  $region22: #{encoder_scores.1} parent=0 // pred_check
    _
  $region23: #{encoder_scores.1} parent=0 // pred_check_branch
    %286 = sbr.rel (0) target = $region25
  $region24: #{encoder_scores.1} parent=0 // pred_region
    _
  $region25: #{encoder_scores.1} parent=0 // pred_fallthru
    _

</llo_original>
